<compile_context>
chip_gen: v7x
topology: tpu7x:2x2x1
jax: 0.10.0
libtpu: 0.0.40
codegen_flags: <defaults>
</compile_context>

<pallas_src>
import functools

import jax
import jax.numpy as jnp
from jax.experimental import pallas as pl
from jax.experimental.pallas import tpu as pltpu


def _round_up(x: int, m: int) -> int:
    return ((x + m - 1) // m) * m


# -----------------------------------------------------------------------------
# Kernel
# -----------------------------------------------------------------------------
def actor_critic_kernel(x_ref, w1_ref, b1_ref, wh_ref, bh_ref, out_ref):
    """One batch tile: shared trunk (VPU FMA + ReLU) -> fused heads (MXU).

    x_ref is the FULL (Bp, obs_dim) input, VMEM-resident across the grid; the
    kernel slices out its own (TB, obs_dim) tile.  Weights/biases are also
    VMEM-resident (constant index_map).
    """
    TB = out_ref.shape[0]
    obs_dim = x_ref.shape[1]

    start = pl.multiple_of(pl.program_id(0) * TB, 8)
    x = x_ref[pl.ds(start, TB), :]                        # (TB, obs_dim)

    # Shared trunk: contraction depth obs_dim=4 is far below MXU systolic
    # depth, so do it as broadcast-FMAs on the VPU, folding the bias into the
    # accumulator init.  (If a bundle dump ever shows the lane-broadcasts
    # binding the XLU, this K=4 contraction can be pushed onto the idle MXU.)
    h = b1_ref[...] + x[:, 0:1] * w1_ref[0:1, :]          # (TB, Hp)
    for k in range(1, obs_dim):                           # static, tiny unroll
        h = h + x[:, k:k + 1] * w1_ref[k:k + 1, :]
    h = jnp.maximum(h, 0.0)                               # ReLU (VPU)

    # Fused actor+critic head: one MXU matmul, one lane-dense (TB, 128) store.
    out_ref[...] = (
        jnp.dot(h, wh_ref[...], preferred_element_type=jnp.float32) + bh_ref[...]
    )


# -----------------------------------------------------------------------------
# One-time parameter prepacking (NOT in the rollout hot loop)
# -----------------------------------------------------------------------------
def prepack_params(params):
    """Pad/fuse parameters once.

    params = (w1, b1, wa, ba, wc, bc) with weights stored as
    (in_features, out_features) — the transpose of nn.Linear.weight — and
    biases as (1, out_features).

    Returns (w1p, b1p, whp, bhp): lane-padded trunk weights and the fused
    actor|critic head weights, ready to be passed straight into pallas_call.
    """
    w1, b1, wa, ba, wc, bc = params
    obs_dim, hidden = w1.shape
    n_actions = wa.shape[1]

    assert b1.shape == (1, hidden)
    assert wa.shape == (hidden, n_actions) and ba.shape == (1, n_actions)
    assert wc.shape == (hidden, 1) and bc.shape == (1, 1)

    Hp = _round_up(max(hidden, 128), 128)     # lane-dense hidden
    Np = 128                                  # lane-dense fused-head output slab
    out_width = n_actions + 1                 # actor logits | critic value

    w1p = jnp.zeros((obs_dim, Hp), jnp.float32).at[:, :hidden].set(w1)
    b1p = jnp.zeros((1, Hp), jnp.float32).at[:, :hidden].set(b1)

    wh = jnp.concatenate([wa, wc], axis=1)            # (hidden, n_actions+1)
    bh = jnp.concatenate([ba, bc], axis=1)            # (1, n_actions+1)
    whp = jnp.zeros((Hp, Np), jnp.float32).at[:hidden, :out_width].set(wh)
    bhp = jnp.zeros((1, Np), jnp.float32).at[:, :out_width].set(bh)

    return (w1p, b1p, whp, bhp)


# -----------------------------------------------------------------------------
# Forward (hot path): just tiling choice + one pallas_call + output slice
# -----------------------------------------------------------------------------
@functools.partial(jax.jit, static_argnames=("n_actions", "tile_batch"))
def actor_critic_forward(x, packed_params, *, n_actions, tile_batch=None):
    """Returns (logits (B, n_actions), value (B, 1)) like the PyTorch module."""
    w1p, b1p, whp, bhp = packed_params
    B, obs_dim = x.shape
    Hp = w1p.shape[1]
    Np = whp.shape[1]

    # ---- batch tiling ---------------------------------------------------------
    if tile_batch is None:
        if B <= 2048:
            TB = _round_up(B, 8)              # one grid step: no pipeline overhead
        else:
            TB = 1024                         # >=2 parallel steps (megacore on v7x),
                                              # live h stays small on v5e
    else:
        TB = max(8, _round_up(tile_batch, 8))
    Bp = _round_up(B, TB)
    # Common case (B multiple of 8, single tile): no padding copy at all.
    xp = x if Bp == B else jnp.zeros((Bp, obs_dim), x.dtype).at[:B, :].set(x)

    grid = (Bp // TB,)

    out = pl.pallas_call(
        actor_critic_kernel,
        out_shape=jax.ShapeDtypeStruct((Bp, Np), jnp.float32),
        grid_spec=pltpu.PrefetchScalarGridSpec(
            num_scalar_prefetch=0,
            grid=grid,
            in_specs=[
                # x: full array, constant block index -> VMEM-resident for the
                # whole grid (one dense DMA instead of per-step 16 B/row DMAs).
                pl.BlockSpec((Bp, obs_dim), lambda i: (0, 0)),
                # weights/biases: constant block index -> VMEM-resident.
                pl.BlockSpec((obs_dim, Hp), lambda i: (0, 0)),
                pl.BlockSpec((1, Hp), lambda i: (0, 0)),
                pl.BlockSpec((Hp, Np), lambda i: (0, 0)),
                pl.BlockSpec((1, Np), lambda i: (0, 0)),
            ],
            out_specs=pl.BlockSpec((TB, Np), lambda i: (i, 0)),
        ),
        compiler_params=pltpu.CompilerParams(
            dimension_semantics=("parallel",),        # megacore-shard batch tiles
            vmem_limit_bytes=32 * 1024 * 1024,        # huge headroom on v5e/v6e/v7x
        ),
    )(xp, w1p, b1p, whp, bhp)

    logits = out[:B, :n_actions]
    value = out[:B, n_actions:n_actions + 1]
    return logits, value


# -----------------------------------------------------------------------------
# Init + demo
# -----------------------------------------------------------------------------
def init_params(key, obs_dim, hidden_dim, n_actions):
    """Deterministic init mimicking nn.Linear's U(-1/sqrt(fan_in), 1/sqrt(fan_in)).

    Weights are (in_features, out_features): the transpose of nn.Linear.weight.
    """
    ks = jax.random.split(key, 6)

    def lin(kw, kb, fan_in, fan_out):
        bound = 1.0 / jnp.sqrt(jnp.float32(fan_in))
        w = jax.random.uniform(kw, (fan_in, fan_out), jnp.float32, -bound, bound)
        b = jax.random.uniform(kb, (1, fan_out), jnp.float32, -bound, bound)
        return w, b

    w1, b1 = lin(ks[0], ks[1], obs_dim, hidden_dim)
    wa, ba = lin(ks[2], ks[3], hidden_dim, n_actions)
    wc, bc = lin(ks[4], ks[5], hidden_dim, 1)
    return (w1, b1, wa, ba, wc, bc)


if __name__ == "__main__":
    # CartPole-v1: obs_dim=4, n_actions=2; small hidden + batch for the demo.
    # Default tiling -> single grid step (grid=(1,)), no batch padding.
    obs_dim, hidden_dim, n_actions = 4, 64, 2
    batch = 32

    key = jax.random.PRNGKey(0)
    k_params, k_x = jax.random.split(key)
    params = init_params(k_params, obs_dim, hidden_dim, n_actions)
    x = jax.random.normal(k_x, (batch, obs_dim), jnp.float32)

    # One-time prepack (outside the rollout hot loop).
    packed = jax.tree_util.tree_map(jax.block_until_ready, prepack_params(params))

    logits, value = actor_critic_forward(x, packed, n_actions=n_actions)
    logits = jax.block_until_ready(logits)
    value = jax.block_until_ready(value)

    # Pure-JAX reference check (same math as the PyTorch module).
    w1, b1, wa, ba, wc, bc = params
    h_ref = jnp.maximum(x @ w1 + b1, 0.0)
    logits_ref = h_ref @ wa + ba
    value_ref = h_ref @ wc + bc

    assert logits.shape == (batch, n_actions)
    assert value.shape == (batch, 1)
    assert jnp.allclose(logits, logits_ref, atol=1e-5, rtol=1e-5)
    assert jnp.allclose(value, value_ref, atol=1e-5, rtol=1e-5)

    print("KERNEL_OK")
</pallas_src>

<mosaic_0001>
module attributes {stable_mosaic.version = 11 : i64} {
  func.func @actor_critic_kernel(%arg0: i32, %arg1: memref<32x4xf32, #tpu.memory_space<vmem>>, %arg2: memref<4x128xf32, #tpu.memory_space<vmem>>, %arg3: memref<1x128xf32, #tpu.memory_space<vmem>>, %arg4: memref<128x128xf32, #tpu.memory_space<vmem>>, %arg5: memref<1x128xf32, #tpu.memory_space<vmem>>, %arg6: memref<32x128xf32, #tpu.memory_space<vmem>>) attributes {dimension_semantics = [#tpu.dimension_semantics<parallel>], iteration_bounds = array<i64: 1>, scalar_prefetch = 0 : i64, scratch_operands = 0 : i64, tpu.core_type = #tpu.core_type<tc>, window_params = [{pipeline_mode = #tpu.pipeline_mode<synchronous>, transform_indices = @transform_0, window_bounds = array<i64: 32, 4>}, {pipeline_mode = #tpu.pipeline_mode<synchronous>, transform_indices = @transform_1, window_bounds = array<i64: 4, 128>}, {pipeline_mode = #tpu.pipeline_mode<synchronous>, transform_indices = @transform_2, window_bounds = array<i64: 1, 128>}, {pipeline_mode = #tpu.pipeline_mode<synchronous>, transform_indices = @transform_3, window_bounds = array<i64: 128, 128>}, {pipeline_mode = #tpu.pipeline_mode<synchronous>, transform_indices = @transform_4, window_bounds = array<i64: 1, 128>}, {transform_indices = @transform_5, window_bounds = array<i64: 32, 128>}]} {
    %c32_i32 = arith.constant 32 : i32
    %0 = arith.muli %arg0, %c32_i32 : i32
    %1 = tpu.assume_multiple %0, 8 : i32
    %2 = arith.index_cast %1 : i32 to index
    %c0 = arith.constant 0 : index
    %3 = vector.load %arg1[%2, %c0] : memref<32x4xf32, #tpu.memory_space<vmem>>, vector<32x4xf32>
    %c0_0 = arith.constant 0 : index
    %c0_1 = arith.constant 0 : index
    %4 = vector.load %arg3[%c0_0, %c0_1] : memref<1x128xf32, #tpu.memory_space<vmem>>, vector<1x128xf32>
    %5 = vector.extract_strided_slice %3 {offsets = [0, 0], sizes = [32, 1], strides = [1, 1]} : vector<32x4xf32> to vector<32x1xf32>
    %c0_2 = arith.constant 0 : index
    %c0_3 = arith.constant 0 : index
    %6 = vector.load %arg2[%c0_2, %c0_3] : memref<4x128xf32, #tpu.memory_space<vmem>>, vector<1x128xf32>
    %7 = vector.broadcast %5 : vector<32x1xf32> to vector<32x128xf32>
    %8 = vector.broadcast %6 : vector<1x128xf32> to vector<32x128xf32>
    %9 = arith.mulf %7, %8 : vector<32x128xf32>
    %10 = vector.broadcast %4 : vector<1x128xf32> to vector<32x128xf32>
    %11 = arith.addf %10, %9 : vector<32x128xf32>
    %12 = vector.extract_strided_slice %3 {offsets = [0, 1], sizes = [32, 1], strides = [1, 1]} : vector<32x4xf32> to vector<32x1xf32>
    %c1 = arith.constant 1 : index
    %c0_4 = arith.constant 0 : index
    %13 = vector.load %arg2[%c1, %c0_4] : memref<4x128xf32, #tpu.memory_space<vmem>>, vector<1x128xf32>
    %14 = vector.broadcast %12 : vector<32x1xf32> to vector<32x128xf32>
    %15 = vector.broadcast %13 : vector<1x128xf32> to vector<32x128xf32>
    %16 = arith.mulf %14, %15 : vector<32x128xf32>
    %17 = arith.addf %11, %16 : vector<32x128xf32>
    %18 = vector.extract_strided_slice %3 {offsets = [0, 2], sizes = [32, 1], strides = [1, 1]} : vector<32x4xf32> to vector<32x1xf32>
    %c2 = arith.constant 2 : index
    %c0_5 = arith.constant 0 : index
    %19 = vector.load %arg2[%c2, %c0_5] : memref<4x128xf32, #tpu.memory_space<vmem>>, vector<1x128xf32>
    %20 = vector.broadcast %18 : vector<32x1xf32> to vector<32x128xf32>
    %21 = vector.broadcast %19 : vector<1x128xf32> to vector<32x128xf32>
    %22 = arith.mulf %20, %21 : vector<32x128xf32>
    %23 = arith.addf %17, %22 : vector<32x128xf32>
    %24 = vector.extract_strided_slice %3 {offsets = [0, 3], sizes = [32, 1], strides = [1, 1]} : vector<32x4xf32> to vector<32x1xf32>
    %c3 = arith.constant 3 : index
    %c0_6 = arith.constant 0 : index
    %25 = vector.load %arg2[%c3, %c0_6] : memref<4x128xf32, #tpu.memory_space<vmem>>, vector<1x128xf32>
    %26 = vector.broadcast %24 : vector<32x1xf32> to vector<32x128xf32>
    %27 = vector.broadcast %25 : vector<1x128xf32> to vector<32x128xf32>
    %28 = arith.mulf %26, %27 : vector<32x128xf32>
    %29 = arith.addf %23, %28 : vector<32x128xf32>
    %cst = arith.constant 0.000000e+00 : f32
    %30 = vector.broadcast %cst : f32 to vector<32x128xf32>
    %31 = arith.maximumf %29, %30 : vector<32x128xf32>
    %c0_7 = arith.constant 0 : index
    %c0_8 = arith.constant 0 : index
    %32 = vector.load %arg4[%c0_7, %c0_8] : memref<128x128xf32, #tpu.memory_space<vmem>>, vector<128x128xf32>
    %cst_9 = arith.constant dense<0.000000e+00> : vector<32x128xf32>
    %33 = tpu.matmul %31, %32, %cst_9 {dimension_numbers = #tpu.dot_dimension_numbers<[1], [0], [0], [1], [0, 0, 1, 1], [], []>} : vector<32x128xf32>, vector<128x128xf32>, vector<32x128xf32> -> vector<32x128xf32>
    %c0_10 = arith.constant 0 : index
    %c0_11 = arith.constant 0 : index
    %34 = vector.load %arg5[%c0_10, %c0_11] : memref<1x128xf32, #tpu.memory_space<vmem>>, vector<1x128xf32>
    %35 = vector.broadcast %34 : vector<1x128xf32> to vector<32x128xf32>
    %36 = arith.addf %33, %35 : vector<32x128xf32>
    %c0_12 = arith.constant 0 : index
    %c0_13 = arith.constant 0 : index
    %37 = vector.load %arg6[%c0_12, %c0_13] : memref<32x128xf32, #tpu.memory_space<vmem>>, vector<32x128xf32>
    tpu.vector_store %arg6[%c0_12, %c0_13], %36 {strides = array<i32>} : memref<32x128xf32, #tpu.memory_space<vmem>>, vector<32x128xf32>,
    return
  }
  func.func @transform_0(%arg0: i32) -> (i32, i32) {
    %c0_i32 = arith.constant 0 : i32
    %c0_i32_0 = arith.constant 0 : i32
    %c0_i32_1 = arith.constant 0 : i32
    return %c0_i32, %c0_i32_0 : i32, i32
  }
  func.func @transform_1(%arg0: i32) -> (i32, i32) {
    %c0_i32 = arith.constant 0 : i32
    %c0_i32_0 = arith.constant 0 : i32
    %c0_i32_1 = arith.constant 0 : i32
    return %c0_i32, %c0_i32_0 : i32, i32
  }
  func.func @transform_2(%arg0: i32) -> (i32, i32) {
    %c0_i32 = arith.constant 0 : i32
    %c0_i32_0 = arith.constant 0 : i32
    %c0_i32_1 = arith.constant 0 : i32
    return %c0_i32, %c0_i32_0 : i32, i32
  }
  func.func @transform_3(%arg0: i32) -> (i32, i32) {
    %c0_i32 = arith.constant 0 : i32
    %c0_i32_0 = arith.constant 0 : i32
    %c0_i32_1 = arith.constant 0 : i32
    return %c0_i32, %c0_i32_0 : i32, i32
  }
  func.func @transform_4(%arg0: i32) -> (i32, i32) {
    %c0_i32 = arith.constant 0 : i32
    %c0_i32_0 = arith.constant 0 : i32
    %c0_i32_1 = arith.constant 0 : i32
    return %c0_i32, %c0_i32_0 : i32, i32
  }
  func.func @transform_5(%arg0: i32) -> (i32, i32) {
    %c0_i32 = arith.constant 0 : i32
    %c0_i32_0 = arith.constant 0 : i32
    return %arg0, %c0_i32 : i32, i32
  }
}

</mosaic_0001>

<llo_original>
// kernel: actor_critic_forward.1
$region0: #{actor_critic_forward.1}
  #allocation0 [shape = 'u32[]', space=smem, size = 0x4, offset = 0x4, fixed_abs, tag = 'smem constant byte address 0x4 - core index']
  #allocation1 [shape = 'u32[144,128]{1,0:T(1,128)}', space=vmem, size = 0x12000, scoped, tag = 'internal scratch']
  %s0 = inlined_call_operand.vmem [shape: f32[32,4], index: 0, kind: input, shape index: {}]
  %s1 = inlined_call_operand.vmem [shape: f32[4,128], index: 1, kind: input, shape index: {}]
  %s2 = inlined_call_operand.vmem [shape: f32[1,128], index: 2, kind: input, shape index: {}]
  %s3 = inlined_call_operand.hbm [shape: f32[128,128], index: 3, kind: input, shape index: {}]
  %s4 = inlined_call_operand.vmem [shape: f32[1,128], index: 4, kind: input, shape index: {}]
  %s5 = inlined_call_operand.vmem [shape: f32[32,128], index: 5, kind: output, shape index: {}]
  %s6 = sld [smem:[#allocation0]]
  $region34: #{actor_critic_forward.1} parent=0
    _
  %s8 = ssub.s32 1, %s6
  %s9 = scalar_select 0, %s8, %s6
  $region1: #{actor_critic_forward.1} parent=0
    #allocation2 [shape = 'u8[65536]{0}', space=vmem, size = 0x10000, scoped, tag = 'input window, operand 3, single buffered']
    #allocation3 [shape = 's32[1]{0}', space=sflag, size = 0x4, scoped, tag = 'scoped memory for actor_critic_forward.1']
    %10 = vsyncpa [#allocation3], 0
    // Predicated region
    $region2: #{actor_critic_forward.1} parent=1 // pred_check
      _
    $region3: #{actor_critic_forward.1} parent=1 // pred_check_branch
      %12 = sbr.rel (0) target = $region5
    $region4: #{actor_critic_forward.1} parent=1 // pred_region
      _
    $region5: #{actor_critic_forward.1} parent=1 // pred_fallthru
      _
    // Predicated region
    $region6: #{actor_critic_forward.1} parent=1 // pred_check
      _
    $region7: #{actor_critic_forward.1} parent=1 // pred_check_branch
      %14 = sbr.rel (0) target = $region9
    $region8: #{actor_critic_forward.1} parent=1 // pred_region
      _
    $region9: #{actor_critic_forward.1} parent=1 // pred_fallthru
      _
    // Predicated region
    $region10: #{actor_critic_forward.1} parent=1 // pred_check
      _
    $region11: #{actor_critic_forward.1} parent=1 // pred_check_branch
      %16 = sbr.rel (0) target = $region13
    $region12: #{actor_critic_forward.1} parent=1 // pred_region
      _
    $region13: #{actor_critic_forward.1} parent=1 // pred_fallthru
      _
    // Predicated region
    $region14: #{actor_critic_forward.1} parent=1 // pred_check
      _
    $region15: #{actor_critic_forward.1} parent=1 // pred_check_branch
      %18 = sbr.rel (0) target = $region17
    $region16: #{actor_critic_forward.1} parent=1 // pred_region
      %s20 = ssub.s32 2048, 2048
      %21 = vsyncadd [#allocation3], %s20
      %s22 = sshll.u32 [#allocation2], 4
      %s23 = int_to_ptr.vmem [resolvable:$true] %s22
      %28 = dma.hbm_to_vmem [thread:$0]  %s3, 2048, %s23, [#allocation3], 128, 128, 8
    $region17: #{actor_critic_forward.1} parent=1 // pred_fallthru
      _
    // Predicated region
    $region18: #{actor_critic_forward.1} parent=1 // pred_check
      _
    $region19: #{actor_critic_forward.1} parent=1 // pred_check_branch
      %30 = sbr.rel (0) target = $region21
    $region20: #{actor_critic_forward.1} parent=1 // pred_region
      _
    $region21: #{actor_critic_forward.1} parent=1 // pred_fallthru
      _
    // Predicated region
    $region22: #{actor_critic_forward.1} parent=1 // pred_check
      _
    $region23: #{actor_critic_forward.1} parent=1 // pred_check_branch
      %32 = sbr.rel (0) target = $region25
    $region24: #{actor_critic_forward.1} parent=1 // pred_region
      %33 = dma.done [#allocation3], 2048
    $region25: #{actor_critic_forward.1} parent=1 // pred_fallthru
      _
    %s34 = smul.u32 0, 32
    %s35 = scalar_lea.vmem %s0, %s34
    %v36 = vld [vmem:[%s35] sm:$0xff]
    %v37 = vld [vmem:[%s35 + $0x8] sm:$0xff]
    %v38 = vld [vmem:[%s35 + $0x10] sm:$0xff]
    %v39 = vld [vmem:[%s35 + $0x18] sm:$0xff]
    %v40 = vld [vmem:[%s2] sm:$0x1]
    %v41 = vld [vmem:[%s1] sm:$0x1]
    %43 = vset.pattern.permute.xlu0 0
    %44 = vperm.xlu0 %43, %v36
    %v45 = vpop.permute.xlu0 %44
    %48 = vset.pattern.permute.xlu0 0
    %49 = vperm.xlu0 %48, %v37
    %v50 = vpop.permute.xlu0 %49
    %53 = vset.pattern.permute.xlu0 0
    %54 = vperm.xlu0 %53, %v38
    %v55 = vpop.permute.xlu0 %54
    %58 = vset.pattern.permute.xlu0 0
    %59 = vperm.xlu0 %58, %v39
    %v60 = vpop.permute.xlu0 %59
    %v62 = vlaneseq
    %v63 = vshrl.u32 %v62, 7
    %v64 = vsub.s32 0, %v63
    %v65 = vrot.slane %v41, %v64
    %v66 = vmul.f32 %v45, %v65
    %v67 = vmul.f32 %v50, %v65
    %v68 = vmul.f32 %v55, %v65
    %v69 = vmul.f32 %v60, %v65
    %v71 = vlaneseq
    %v72 = vshrl.u32 %v71, 7
    %v73 = vsub.s32 0, %v72
    %v74 = vrot.slane %v40, %v73
    %v76 = vadd.f32 %v74, %v66
    %v77 = vadd.f32 %v74, %v67
    %v78 = vadd.f32 %v74, %v68
    %v79 = vadd.f32 %v74, %v69
    %v80 = vld [vmem:[%s1 + $0x1] sm:$0x1]
    %81 = vset.pattern.permute.xlu0 1
    %82 = vperm.xlu0 %81, %v36
    %v83 = vpop.permute.xlu0 %82
    %85 = vset.pattern.permute.xlu0 1
    %86 = vperm.xlu0 %85, %v37
    %v87 = vpop.permute.xlu0 %86
    %89 = vset.pattern.permute.xlu0 1
    %90 = vperm.xlu0 %89, %v38
    %v91 = vpop.permute.xlu0 %90
    %93 = vset.pattern.permute.xlu0 1
    %94 = vperm.xlu0 %93, %v39
    %v95 = vpop.permute.xlu0 %94
    %v97 = vlaneseq
    %v98 = vshrl.u32 %v97, 7
    %v99 = vsub.s32 0, %v98
    %v100 = vrot.slane %v80, %v99
    %v101 = vmul.f32 %v83, %v100
    %v102 = vmul.f32 %v87, %v100
    %v103 = vmul.f32 %v91, %v100
    %v104 = vmul.f32 %v95, %v100
    %v105 = vadd.f32 %v76, %v101
    %v106 = vadd.f32 %v77, %v102
    %v107 = vadd.f32 %v78, %v103
    %v108 = vadd.f32 %v79, %v104
    %v109 = vld [vmem:[%s1 + $0x2] sm:$0x1]
    %110 = vset.pattern.permute.xlu0 2
    %111 = vperm.xlu0 %110, %v36
    %v112 = vpop.permute.xlu0 %111
    %114 = vset.pattern.permute.xlu0 2
    %115 = vperm.xlu0 %114, %v37
    %v116 = vpop.permute.xlu0 %115
    %118 = vset.pattern.permute.xlu0 2
    %119 = vperm.xlu0 %118, %v38
    %v120 = vpop.permute.xlu0 %119
    %122 = vset.pattern.permute.xlu0 2
    %123 = vperm.xlu0 %122, %v39
    %v124 = vpop.permute.xlu0 %123
    %v126 = vlaneseq
    %v127 = vshrl.u32 %v126, 7
    %v128 = vsub.s32 0, %v127
    %v129 = vrot.slane %v109, %v128
    %v130 = vmul.f32 %v112, %v129
    %v131 = vmul.f32 %v116, %v129
    %v132 = vmul.f32 %v120, %v129
    %v133 = vmul.f32 %v124, %v129
    %v134 = vadd.f32 %v105, %v130
    %v135 = vadd.f32 %v106, %v131
    %v136 = vadd.f32 %v107, %v132
    %v137 = vadd.f32 %v108, %v133
    %v138 = vld [vmem:[%s1 + $0x3] sm:$0x1]
    %139 = vset.pattern.permute.xlu0 3
    %140 = vperm.xlu0 %139, %v36
    %v141 = vpop.permute.xlu0 %140
    %143 = vset.pattern.permute.xlu0 3
    %144 = vperm.xlu0 %143, %v37
    %v145 = vpop.permute.xlu0 %144
    %147 = vset.pattern.permute.xlu0 3
    %148 = vperm.xlu0 %147, %v38
    %v149 = vpop.permute.xlu0 %148
    %151 = vset.pattern.permute.xlu0 3
    %152 = vperm.xlu0 %151, %v39
    %v153 = vpop.permute.xlu0 %152
    %v155 = vlaneseq
    %v156 = vshrl.u32 %v155, 7
    %v157 = vsub.s32 0, %v156
    %v158 = vrot.slane %v138, %v157
    %v159 = vmul.f32 %v141, %v158
    %v160 = vmul.f32 %v145, %v158
    %v161 = vmul.f32 %v149, %v158
    %v162 = vmul.f32 %v153, %v158
    %v163 = vadd.f32 %v134, %v159
    %v164 = vadd.f32 %v135, %v160
    %v165 = vadd.f32 %v136, %v161
    %v166 = vadd.f32 %v137, %v162
    %v167 = vmax.f32 %v163, 0.0
    %v168 = vmax.f32 %v164, 0.0
    %v169 = vmax.f32 %v165, 0.0
    %v170 = vmax.f32 %v166, 0.0
    %v171 = vld [vmem:[#allocation2] sm:$0xff]
    %v172 = vld [vmem:[#allocation2 + $0x8] sm:$0xff]
    %v173 = vld [vmem:[#allocation2 + $0x10] sm:$0xff]
    %v174 = vld [vmem:[#allocation2 + $0x18] sm:$0xff]
    %v175 = vld [vmem:[#allocation2 + $0x20] sm:$0xff]
    %v176 = vld [vmem:[#allocation2 + $0x28] sm:$0xff]
    %v177 = vld [vmem:[#allocation2 + $0x30] sm:$0xff]
    %v178 = vld [vmem:[#allocation2 + $0x38] sm:$0xff]
    %v179 = vld [vmem:[#allocation2 + $0x40] sm:$0xff]
    %v180 = vld [vmem:[#allocation2 + $0x48] sm:$0xff]
    %v181 = vld [vmem:[#allocation2 + $0x50] sm:$0xff]
    %v182 = vld [vmem:[#allocation2 + $0x58] sm:$0xff]
    %v183 = vld [vmem:[#allocation2 + $0x60] sm:$0xff]
    %v184 = vld [vmem:[#allocation2 + $0x68] sm:$0xff]
    %v185 = vld [vmem:[#allocation2 + $0x70] sm:$0xff]
    %v186 = vld [vmem:[#allocation2 + $0x78] sm:$0xff]
    %v187 = vld [vmem:[%s4] sm:$0x1]
    %v189 = vlaneseq
    %v190 = vshrl.u32 %v189, 7
    %v191 = vsub.s32 0, %v190
    %v192 = vrot.slane %v187, %v191
    %194 = vmatprep.subr.mxu0 0.0
    %195 = vmatpush1.msra.mxu0 %v171
    %196 = vmatprep.subr.mxu0 0.0
    %197 = vmatpush1.msra.mxu0 %v172
    %198 = vmatprep.subr.mxu0 0.0
    %199 = vmatpush1.msra.mxu0 %v173
    %200 = vmatprep.subr.mxu0 0.0
    %201 = vmatpush1.msra.mxu0 %v174
    %202 = vmatprep.subr.mxu0 0.0
    %203 = vmatpush1.msra.mxu0 %v175
    %204 = vmatprep.subr.mxu0 0.0
    %205 = vmatpush1.msra.mxu0 %v176
    %206 = vmatprep.subr.mxu0 0.0
    %207 = vmatpush1.msra.mxu0 %v177
    %208 = vmatprep.subr.mxu0 0.0
    %209 = vmatpush1.msra.mxu0 %v178
    %210 = vmatprep.subr.mxu0 0.0
    %211 = vmatpush1.msra.mxu0 %v179
    %212 = vmatprep.subr.mxu0 0.0
    %213 = vmatpush1.msra.mxu0 %v180
    %214 = vmatprep.subr.mxu0 0.0
    %215 = vmatpush1.msra.mxu0 %v181
    %216 = vmatprep.subr.mxu0 0.0
    %217 = vmatpush1.msra.mxu0 %v182
    %218 = vmatprep.subr.mxu0 0.0
    %219 = vmatpush1.msra.mxu0 %v183
    %220 = vmatprep.subr.mxu0 0.0
    %221 = vmatpush1.msra.mxu0 %v184
    %222 = vmatprep.subr.mxu0 0.0
    %223 = vmatpush1.msra.mxu0 %v185
    %224 = vmatprep.subr.mxu0 0.0
    %225 = vmatpush1.msra.mxu0 %v186
    %226 = vmatprep.subr.mxu0 0.0
    %227 = vmatpush1.msra.mxu0 0.0
    %228 = vmatprep.subr.mxu0 0.0
    %229 = vmatpush1.msra.mxu0 0.0
    %230 = vmatprep.subr.mxu0 0.0
    %231 = vmatpush1.msra.mxu0 0.0
    %232 = vmatprep.subr.mxu0 0.0
    %233 = vmatpush1.msra.mxu0 0.0
    %234 = vmatprep.subr.mxu0 0.0
    %235 = vmatpush1.msra.mxu0 0.0
    %236 = vmatprep.subr.mxu0 0.0
    %237 = vmatpush1.msra.mxu0 0.0
    %238 = vmatprep.subr.mxu0 0.0
    %239 = vmatpush1.msra.mxu0 0.0
    %240 = vmatprep.subr.mxu0 0.0
    %241 = vmatpush1.msra.mxu0 0.0
    %242 = vmatprep.subr.mxu0 0.0
    %243 = vmatpush1.msra.mxu0 0.0
    %244 = vmatprep.subr.mxu0 0.0
    %245 = vmatpush1.msra.mxu0 0.0
    %246 = vmatprep.subr.mxu0 0.0
    %247 = vmatpush1.msra.mxu0 0.0
    %248 = vmatprep.subr.mxu0 0.0
    %249 = vmatpush1.msra.mxu0 0.0
    %250 = vmatprep.subr.mxu0 0.0
    %251 = vmatpush1.msra.mxu0 0.0
    %252 = vmatprep.subr.mxu0 0.0
    %253 = vmatpush1.msra.mxu0 0.0
    %254 = vmatprep.subr.mxu0 0.0
    %255 = vmatpush1.msra.mxu0 0.0
    %256 = vmatprep.subr.mxu0 0.0
    %257 = vmatpush1.msra.mxu0 0.0
    %258 = vmatprep.mubr.f32.mxu0 0.0
    %259 = vmatmul.mubr.f32.gmra.mrb[0].mxu0 %v167
    %v260 = vpop.f32.mrb[0].mxu0
    %v261 = vadd.f32 %v192, %v260
    %v262 = vpop.f32.mrb[0].mxu0
    %263 = vmatprep.mubr.f32.mxu0 0.0
    %264 = vmatmul.mubr.f32.gmra.mrb[0].mxu0 %v168
    %v265 = vpop.f32.mrb[0].mxu0
    %v266 = vadd.f32 %v192, %v265
    %v267 = vpop.f32.mrb[0].mxu0
    %268 = vmatprep.mubr.f32.mxu0 0.0
    %269 = vmatmul.mubr.f32.gmra.mrb[0].mxu0 %v169
    %v270 = vpop.f32.mrb[0].mxu0
    %v271 = vadd.f32 %v192, %v270
    %v272 = vpop.f32.mrb[0].mxu0
    %273 = vmatprep.mubr.f32.mxu0 0.0
    %274 = vmatmul.mubr.f32.gmra.mrb[0].mxu0 %v170
    %v275 = vpop.f32.mrb[0].mxu0
    %v276 = vadd.f32 %v192, %v275
    %v277 = vpop.f32.mrb[0].mxu0
    %278 = vdwg.mxu0
    %279 = vst [vmem:[%s5] sm:$0xff] %v261
    %280 = vst [vmem:[%s5 + $0x8] sm:$0xff] %v266
    %281 = vst [vmem:[%s5 + $0x10] sm:$0xff] %v271
    %282 = vst [vmem:[%s5 + $0x18] sm:$0xff] %v276
    // Predicated region
    $region26: #{actor_critic_forward.1} parent=1 // pred_check
      _
    $region27: #{actor_critic_forward.1} parent=1 // pred_check_branch
      %284 = sbr.rel (0) target = $region29
    $region28: #{actor_critic_forward.1} parent=1 // pred_region
      _
    $region29: #{actor_critic_forward.1} parent=1 // pred_fallthru
      _
    // Predicated region
    $region30: #{actor_critic_forward.1} parent=1 // pred_check
      _
    $region31: #{actor_critic_forward.1} parent=1 // pred_check_branch
      %286 = sbr.rel (0) target = $region33
    $region32: #{actor_critic_forward.1} parent=1 // pred_region
      _
    $region33: #{actor_critic_forward.1} parent=1 // pred_fallthru
      _
    %287 = vsyncpa [#allocation3], 1

</llo_original>
